<compile_context>
chip_gen: v5e
topology: v5e:2x2
jax: 0.10.0
libtpu: 0.0.40
codegen_flags: <defaults>
</compile_context>

<pallas_src>
import functools

import jax
import jax.numpy as jnp
from jax import lax
from jax.experimental import pallas as pl
from jax.experimental.pallas import tpu as pltpu


def mhsa_kernel(x_ref, wqkv_ref, bqkv_ref, wo_ref, bo_ref, o_ref, ctx_ref, *,
                head):
    # Block shapes:
    #   x_ref / o_ref : (1, n, f)   current batch element (x is bf16)
    #   wqkv_ref      : (f, 3f)     packed [Wq / sqrt(f) | Wk | Wv], bf16
    #   bqkv_ref      : (1, 3f)     packed biases, f32
    #   wo_ref        : (f, f)      bf16
    #   bo_ref        : (1, f)      f32
    #   ctx_ref       : (n, f)      bf16 VMEM scratch for per-head context
    x = x_ref[0]                                        # (n, f) bf16
    n, f = x.shape
    hd = f // head

    # Fused QKV projection: one MXU run (K=f, N=3f) instead of three
    # fill/drain phases; single bias-add VPU pass; f32 accumulation.
    qkv = jnp.dot(x, wqkv_ref[...],
                  preferred_element_type=jnp.float32) + bqkv_ref[...]   # (n, 3f)

    q = qkv[:, :f].astype(jnp.bfloat16)                 # scale already folded in
    k = qkv[:, f:2 * f].astype(jnp.bfloat16)
    v = qkv[:, 2 * f:].astype(jnp.bfloat16)

    # Contract last dims of q_h / k_h directly (no materialized K^T).
    dn_qk = (((1,), (1,)), ((), ()))

    # Per-head attention.  Each head's context lands in ctx_ref[:, h*hd:...],
    # so nothing but the scratch ref is carried across iterations (bounded
    # liveness) and the output projection below runs once at full K=f.
    # NOTE: the loop stays a static Python loop with lane-static slices; a
    # lax.fori_loop would need dynamic lane-offset slicing, which Mosaic does
    # not lower reliably for sub-128 head widths.
    for h in range(head):
        sl = slice(h * hd, (h + 1) * hd)
        qh = q[:, sl]                                   # (n, hd) bf16
        kh = k[:, sl]
        vh = v[:, sl]
        logits = lax.dot_general(qh, kh, dn_qk,
                                 preferred_element_type=jnp.float32)    # (n, n)
        m = jnp.max(logits, axis=-1, keepdims=True)
        e = jnp.exp(logits - m)                         # f32, unnormalized
        # Deferred normalization: scale the (n, hd) PV product instead of the
        # (n, n) probability matrix; approx reciprocal runs on the EUP slot.
        r = pl.reciprocal(jnp.sum(e, axis=-1, keepdims=True), approx=True)
        pv = jnp.dot(e.astype(jnp.bfloat16), vh,
                     preferred_element_type=jnp.float32)                # (n, hd)
        # TODO(synk): for hd < 128 these lane-offset writes are masked stores;
        # pairing heads into 128-wide chunks would make them lane-aligned.
        ctx_ref[:, sl] = (pv * r).astype(jnp.bfloat16)

    # Output projection at full contraction depth K=f (single MXU run).
    out = jnp.dot(ctx_ref[...], wo_ref[...],
                  preferred_element_type=jnp.float32) + bo_ref[...]
    # TODO(synk): nn.Dropout(p=0.0) is the identity at inference; no-op here.
    o_ref[0] = out.astype(o_ref.dtype)


def mhsa_pallas(x, params, head):
    b, n, f = x.shape
    assert f % head == 0, "feats must be divisible by head"
    wq, bq, wk, bk, wv, bv, wo, bo = params
    inv_sqrt_d = 1.0 / (float(f) ** 0.5)        # module scales by sqrt(feats)

    # Host-side packing: fused QKV weight with the attention scale folded into
    # the Q columns; all MXU operands cast to bf16 (MXU-native on v5e/v6e/v7x,
    # halves weight DMA + resident VMEM); biases stay f32 (added to f32 acc).
    wqkv = jnp.concatenate([wq * inv_sqrt_d, wk, wv], axis=1).astype(jnp.bfloat16)
    bqkv = jnp.concatenate([bq * inv_sqrt_d, bk, bv], axis=1).astype(jnp.float32)
    wo_bf16 = wo.astype(jnp.bfloat16)
    bo_f32 = bo.astype(jnp.float32)
    x_bf16 = x.astype(jnp.bfloat16)

    kernel = functools.partial(mhsa_kernel, head=head)

    # Weights/biases use a constant index_map -> fetched once, kept resident.
    # TODO(synk): for f >= 1024 on v7x add pipeline_mode=pl.Buffered(1) to the
    # constant weight specs to drop their default double-buffering.
    wqkv_spec = pl.BlockSpec((f, 3 * f), lambda i: (0, 0))
    bqkv_spec = pl.BlockSpec((1, 3 * f), lambda i: (0, 0))
    wo_spec = pl.BlockSpec((f, f), lambda i: (0, 0))
    bo_spec = pl.BlockSpec((1, f), lambda i: (0, 0))

    return pl.pallas_call(
        kernel,
        out_shape=jax.ShapeDtypeStruct((b, n, f), x.dtype),
        grid=(b,),
        in_specs=[
            pl.BlockSpec((1, n, f), lambda i: (i, 0, 0)),   # x
            wqkv_spec, bqkv_spec,                           # fused qkv
            wo_spec, bo_spec,                               # output proj
        ],
        out_specs=pl.BlockSpec((1, n, f), lambda i: (i, 0, 0)),
        scratch_shapes=[pltpu.VMEM((n, f), jnp.bfloat16)],  # per-head context
        compiler_params=pltpu.CompilerParams(
            dimension_semantics=("parallel",),   # batch axis feeds both TCs
            vmem_limit_bytes=48 * 1024 * 1024),
    )(x_bf16, wqkv, bqkv, wo_bf16, bo_f32)


def mhsa_reference(x, params, head):
    """Pure-JAX f32 reference mirroring the PyTorch forward."""
    wq, bq, wk, bk, wv, bv, wo, bo = params
    b, n, f = x.shape
    hd = f // head
    sqrt_d = float(f) ** 0.5

    def proj(w, bias):
        return (x @ w + bias).reshape(b, n, head, hd).transpose(0, 2, 1, 3)

    q = proj(wq, bq)
    k = proj(wk, bk)
    v = proj(wv, bv)
    score = jax.nn.softmax(jnp.einsum('bhif,bhjf->bhij', q, k) / sqrt_d, axis=-1)
    attn = jnp.einsum('bhij,bhjf->bihf', score, v).reshape(b, n, f)
    return attn @ wo + bo


if __name__ == "__main__":
    # Small shapes consistent with the module: batch=2, seq=8, feats=32, head=8
    # (last dim 32 is lane-sparse; at production ViT shapes f is a multiple of
    # 128 and the stores are unmasked).
    B, N, F, HEAD = 2, 8, 32, 8

    key = jax.random.PRNGKey(0)
    ks = jax.random.split(key, 9)
    scale = 0.1
    # Weights stored as (in, out); biases as (1, out).
    wq = scale * jax.random.normal(ks[0], (F, F), jnp.float32)
    bq = scale * jax.random.normal(ks[1], (1, F), jnp.float32)
    wk = scale * jax.random.normal(ks[2], (F, F), jnp.float32)
    bk = scale * jax.random.normal(ks[3], (1, F), jnp.float32)
    wv = scale * jax.random.normal(ks[4], (F, F), jnp.float32)
    bv = scale * jax.random.normal(ks[5], (1, F), jnp.float32)
    wo = scale * jax.random.normal(ks[6], (F, F), jnp.float32)
    bo = scale * jax.random.normal(ks[7], (1, F), jnp.float32)
    params = (wq, bq, wk, bk, wv, bv, wo, bo)

    x = jax.random.normal(ks[8], (B, N, F), jnp.float32)

    out = mhsa_pallas(x, params, HEAD)
    out = jax.block_until_ready(out)

    ref = mhsa_reference(x, params, HEAD)
    assert out.shape == (B, N, F)
    # bf16 MXU operands + approx reciprocal -> looser tolerance than pure f32.
    assert jnp.allclose(out, ref, atol=3e-2, rtol=3e-2), "mismatch vs reference"

    print("KERNEL_OK")
</pallas_src>

<mosaic_0001>
module attributes {stable_mosaic.version = 11 : i64} {
  func.func @mhsa_kernel(%arg0: i32, %arg1: memref<1x8x32xbf16, #tpu.memory_space<vmem>>, %arg2: memref<32x96xbf16, #tpu.memory_space<vmem>>, %arg3: memref<1x96xf32, #tpu.memory_space<vmem>>, %arg4: memref<32x32xbf16, #tpu.memory_space<vmem>>, %arg5: memref<1x32xf32, #tpu.memory_space<vmem>>, %arg6: memref<1x8x32xf32, #tpu.memory_space<vmem>>, %arg7: memref<8x32xbf16, #tpu.memory_space<vmem>>) attributes {dimension_semantics = [#tpu.dimension_semantics<parallel>], iteration_bounds = array<i64: 2>, scalar_prefetch = 0 : i64, scratch_operands = 1 : i64, tpu.core_type = #tpu.core_type<tc>, window_params = [{transform_indices = @transform_0, window_bounds = array<i64: 1, 8, 32>}, {pipeline_mode = #tpu.pipeline_mode<synchronous>, transform_indices = @transform_1, window_bounds = array<i64: 32, 96>}, {pipeline_mode = #tpu.pipeline_mode<synchronous>, transform_indices = @transform_2, window_bounds = array<i64: 1, 96>}, {pipeline_mode = #tpu.pipeline_mode<synchronous>, transform_indices = @transform_3, window_bounds = array<i64: 32, 32>}, {pipeline_mode = #tpu.pipeline_mode<synchronous>, transform_indices = @transform_4, window_bounds = array<i64: 1, 32>}, {transform_indices = @transform_5, window_bounds = array<i64: 1, 8, 32>}]} {
    %c0 = arith.constant 0 : index
    %c0_0 = arith.constant 0 : index
    %c0_1 = arith.constant 0 : index
    %0 = vector.load %arg1[%c0, %c0_0, %c0_1] : memref<1x8x32xbf16, #tpu.memory_space<vmem>>, vector<1x8x32xbf16>
    %1 = vector.shape_cast %0 : vector<1x8x32xbf16> to vector<8x32xbf16>
    %c0_2 = arith.constant 0 : index
    %c0_3 = arith.constant 0 : index
    %2 = vector.load %arg2[%c0_2, %c0_3] : memref<32x96xbf16, #tpu.memory_space<vmem>>, vector<32x96xbf16>
    %cst = arith.constant dense<0.000000e+00> : vector<8x96xf32>
    %3 = tpu.matmul %1, %2, %cst {dimension_numbers = #tpu.dot_dimension_numbers<[1], [0], [0], [1], [0, 0, 1, 1], [], []>} : vector<8x32xbf16>, vector<32x96xbf16>, vector<8x96xf32> -> vector<8x96xf32>
    %c0_4 = arith.constant 0 : index
    %c0_5 = arith.constant 0 : index
    %4 = vector.load %arg3[%c0_4, %c0_5] : memref<1x96xf32, #tpu.memory_space<vmem>>, vector<1x96xf32>
    %5 = vector.broadcast %4 : vector<1x96xf32> to vector<8x96xf32>
    %6 = arith.addf %3, %5 : vector<8x96xf32>
    %7 = vector.extract_strided_slice %6 {offsets = [0, 0], sizes = [8, 32], strides = [1, 1]} : vector<8x96xf32> to vector<8x32xf32>
    %8 = arith.truncf %7 : vector<8x32xf32> to vector<8x32xbf16>
    %9 = vector.extract_strided_slice %6 {offsets = [0, 32], sizes = [8, 32], strides = [1, 1]} : vector<8x96xf32> to vector<8x32xf32>
    %10 = arith.truncf %9 : vector<8x32xf32> to vector<8x32xbf16>
    %11 = vector.extract_strided_slice %6 {offsets = [0, 64], sizes = [8, 32], strides = [1, 1]} : vector<8x96xf32> to vector<8x32xf32>
    %12 = arith.truncf %11 : vector<8x32xf32> to vector<8x32xbf16>
    %13 = vector.extract_strided_slice %8 {offsets = [0, 0], sizes = [8, 4], strides = [1, 1]} : vector<8x32xbf16> to vector<8x4xbf16>
    %14 = vector.extract_strided_slice %10 {offsets = [0, 0], sizes = [8, 4], strides = [1, 1]} : vector<8x32xbf16> to vector<8x4xbf16>
    %15 = vector.extract_strided_slice %12 {offsets = [0, 0], sizes = [8, 4], strides = [1, 1]} : vector<8x32xbf16> to vector<8x4xbf16>
    %cst_6 = arith.constant dense<0.000000e+00> : vector<8x8xf32>
    %16 = tpu.matmul %13, %14, %cst_6 {dimension_numbers = #tpu.dot_dimension_numbers<[1], [1], [0], [0], [0, 0, 1, 0], [], []>} : vector<8x4xbf16>, vector<8x4xbf16>, vector<8x8xf32> -> vector<8x8xf32>
    %cst_7 = arith.constant dense<0xFF800000> : vector<8xf32>
    %17 = vector.multi_reduction <maximumf>, %16, %cst_7 [1] : vector<8x8xf32> to vector<8xf32>
    %18 = vector.shape_cast %17 : vector<8xf32> to vector<8x1xf32>
    %19 = vector.broadcast %18 : vector<8x1xf32> to vector<8x8xf32>
    %20 = arith.subf %16, %19 : vector<8x8xf32>
    %21 = math.exp %20 : vector<8x8xf32>
    %cst_8 = arith.constant dense<0.000000e+00> : vector<8xf32>
    %22 = vector.multi_reduction <add>, %21, %cst_8 [1] : vector<8x8xf32> to vector<8xf32>
    %23 = vector.shape_cast %22 : vector<8xf32> to vector<8x1xf32>
    %24 = tpu.reciprocal %23 {approx = true} : vector<8x1xf32> -> vector<8x1xf32>
    %25 = arith.truncf %21 : vector<8x8xf32> to vector<8x8xbf16>
    %cst_9 = arith.constant dense<0.000000e+00> : vector<8x4xf32>
    %26 = tpu.matmul %25, %15, %cst_9 {dimension_numbers = #tpu.dot_dimension_numbers<[1], [0], [0], [1], [0, 0, 1, 1], [], []>} : vector<8x8xbf16>, vector<8x4xbf16>, vector<8x4xf32> -> vector<8x4xf32>
    %27 = vector.broadcast %24 : vector<8x1xf32> to vector<8x4xf32>
    %28 = arith.mulf %26, %27 : vector<8x4xf32>
    %29 = arith.truncf %28 : vector<8x4xf32> to vector<8x4xbf16>
    %c0_10 = arith.constant 0 : index
    %c0_11 = arith.constant 0 : index
    %30 = vector.load %arg7[%c0_10, %c0_11] : memref<8x32xbf16, #tpu.memory_space<vmem>>, vector<8x4xbf16>
    tpu.vector_store %arg7[%c0_10, %c0_11], %29 {strides = array<i32>} : memref<8x32xbf16, #tpu.memory_space<vmem>>, vector<8x4xbf16>,
    %31 = vector.extract_strided_slice %8 {offsets = [0, 4], sizes = [8, 4], strides = [1, 1]} : vector<8x32xbf16> to vector<8x4xbf16>
    %32 = vector.extract_strided_slice %10 {offsets = [0, 4], sizes = [8, 4], strides = [1, 1]} : vector<8x32xbf16> to vector<8x4xbf16>
    %33 = vector.extract_strided_slice %12 {offsets = [0, 4], sizes = [8, 4], strides = [1, 1]} : vector<8x32xbf16> to vector<8x4xbf16>
    %cst_12 = arith.constant dense<0.000000e+00> : vector<8x8xf32>
    %34 = tpu.matmul %31, %32, %cst_12 {dimension_numbers = #tpu.dot_dimension_numbers<[1], [1], [0], [0], [0, 0, 1, 0], [], []>} : vector<8x4xbf16>, vector<8x4xbf16>, vector<8x8xf32> -> vector<8x8xf32>
    %cst_13 = arith.constant dense<0xFF800000> : vector<8xf32>
    %35 = vector.multi_reduction <maximumf>, %34, %cst_13 [1] : vector<8x8xf32> to vector<8xf32>
    %36 = vector.shape_cast %35 : vector<8xf32> to vector<8x1xf32>
    %37 = vector.broadcast %36 : vector<8x1xf32> to vector<8x8xf32>
    %38 = arith.subf %34, %37 : vector<8x8xf32>
    %39 = math.exp %38 : vector<8x8xf32>
    %cst_14 = arith.constant dense<0.000000e+00> : vector<8xf32>
    %40 = vector.multi_reduction <add>, %39, %cst_14 [1] : vector<8x8xf32> to vector<8xf32>
    %41 = vector.shape_cast %40 : vector<8xf32> to vector<8x1xf32>
    %42 = tpu.reciprocal %41 {approx = true} : vector<8x1xf32> -> vector<8x1xf32>
    %43 = arith.truncf %39 : vector<8x8xf32> to vector<8x8xbf16>
    %cst_15 = arith.constant dense<0.000000e+00> : vector<8x4xf32>
    %44 = tpu.matmul %43, %33, %cst_15 {dimension_numbers = #tpu.dot_dimension_numbers<[1], [0], [0], [1], [0, 0, 1, 1], [], []>} : vector<8x8xbf16>, vector<8x4xbf16>, vector<8x4xf32> -> vector<8x4xf32>
    %45 = vector.broadcast %42 : vector<8x1xf32> to vector<8x4xf32>
    %46 = arith.mulf %44, %45 : vector<8x4xf32>
    %47 = arith.truncf %46 : vector<8x4xf32> to vector<8x4xbf16>
    %c0_16 = arith.constant 0 : index
    %c4 = arith.constant 4 : index
    %48 = vector.load %arg7[%c0_16, %c4] : memref<8x32xbf16, #tpu.memory_space<vmem>>, vector<8x4xbf16>
    tpu.vector_store %arg7[%c0_16, %c4], %47 {strides = array<i32>} : memref<8x32xbf16, #tpu.memory_space<vmem>>, vector<8x4xbf16>,
    %49 = vector.extract_strided_slice %8 {offsets = [0, 8], sizes = [8, 4], strides = [1, 1]} : vector<8x32xbf16> to vector<8x4xbf16>
    %50 = vector.extract_strided_slice %10 {offsets = [0, 8], sizes = [8, 4], strides = [1, 1]} : vector<8x32xbf16> to vector<8x4xbf16>
    %51 = vector.extract_strided_slice %12 {offsets = [0, 8], sizes = [8, 4], strides = [1, 1]} : vector<8x32xbf16> to vector<8x4xbf16>
    %cst_17 = arith.constant dense<0.000000e+00> : vector<8x8xf32>
    %52 = tpu.matmul %49, %50, %cst_17 {dimension_numbers = #tpu.dot_dimension_numbers<[1], [1], [0], [0], [0, 0, 1, 0], [], []>} : vector<8x4xbf16>, vector<8x4xbf16>, vector<8x8xf32> -> vector<8x8xf32>
    %cst_18 = arith.constant dense<0xFF800000> : vector<8xf32>
    %53 = vector.multi_reduction <maximumf>, %52, %cst_18 [1] : vector<8x8xf32> to vector<8xf32>
    %54 = vector.shape_cast %53 : vector<8xf32> to vector<8x1xf32>
    %55 = vector.broadcast %54 : vector<8x1xf32> to vector<8x8xf32>
    %56 = arith.subf %52, %55 : vector<8x8xf32>
    %57 = math.exp %56 : vector<8x8xf32>
    %cst_19 = arith.constant dense<0.000000e+00> : vector<8xf32>
    %58 = vector.multi_reduction <add>, %57, %cst_19 [1] : vector<8x8xf32> to vector<8xf32>
    %59 = vector.shape_cast %58 : vector<8xf32> to vector<8x1xf32>
    %60 = tpu.reciprocal %59 {approx = true} : vector<8x1xf32> -> vector<8x1xf32>
    %61 = arith.truncf %57 : vector<8x8xf32> to vector<8x8xbf16>
    %cst_20 = arith.constant dense<0.000000e+00> : vector<8x4xf32>
    %62 = tpu.matmul %61, %51, %cst_20 {dimension_numbers = #tpu.dot_dimension_numbers<[1], [0], [0], [1], [0, 0, 1, 1], [], []>} : vector<8x8xbf16>, vector<8x4xbf16>, vector<8x4xf32> -> vector<8x4xf32>
    %63 = vector.broadcast %60 : vector<8x1xf32> to vector<8x4xf32>
    %64 = arith.mulf %62, %63 : vector<8x4xf32>
    %65 = arith.truncf %64 : vector<8x4xf32> to vector<8x4xbf16>
    %c0_21 = arith.constant 0 : index
    %c8 = arith.constant 8 : index
    %66 = vector.load %arg7[%c0_21, %c8] : memref<8x32xbf16, #tpu.memory_space<vmem>>, vector<8x4xbf16>
    tpu.vector_store %arg7[%c0_21, %c8], %65 {strides = array<i32>} : memref<8x32xbf16, #tpu.memory_space<vmem>>, vector<8x4xbf16>,
    %67 = vector.extract_strided_slice %8 {offsets = [0, 12], sizes = [8, 4], strides = [1, 1]} : vector<8x32xbf16> to vector<8x4xbf16>
    %68 = vector.extract_strided_slice %10 {offsets = [0, 12], sizes = [8, 4], strides = [1, 1]} : vector<8x32xbf16> to vector<8x4xbf16>
    %69 = vector.extract_strided_slice %12 {offsets = [0, 12], sizes = [8, 4], strides = [1, 1]} : vector<8x32xbf16> to vector<8x4xbf16>
    %cst_22 = arith.constant dense<0.000000e+00> : vector<8x8xf32>
    %70 = tpu.matmul %67, %68, %cst_22 {dimension_numbers = #tpu.dot_dimension_numbers<[1], [1], [0], [0], [0, 0, 1, 0], [], []>} : vector<8x4xbf16>, vector<8x4xbf16>, vector<8x8xf32> -> vector<8x8xf32>
    %cst_23 = arith.constant dense<0xFF800000> : vector<8xf32>
    %71 = vector.multi_reduction <maximumf>, %70, %cst_23 [1] : vector<8x8xf32> to vector<8xf32>
    %72 = vector.shape_cast %71 : vector<8xf32> to vector<8x1xf32>
    %73 = vector.broadcast %72 : vector<8x1xf32> to vector<8x8xf32>
    %74 = arith.subf %70, %73 : vector<8x8xf32>
    %75 = math.exp %74 : vector<8x8xf32>
    %cst_24 = arith.constant dense<0.000000e+00> : vector<8xf32>
    %76 = vector.multi_reduction <add>, %75, %cst_24 [1] : vector<8x8xf32> to vector<8xf32>
    %77 = vector.shape_cast %76 : vector<8xf32> to vector<8x1xf32>
    %78 = tpu.reciprocal %77 {approx = true} : vector<8x1xf32> -> vector<8x1xf32>
    %79 = arith.truncf %75 : vector<8x8xf32> to vector<8x8xbf16>
    %cst_25 = arith.constant dense<0.000000e+00> : vector<8x4xf32>
    %80 = tpu.matmul %79, %69, %cst_25 {dimension_numbers = #tpu.dot_dimension_numbers<[1], [0], [0], [1], [0, 0, 1, 1], [], []>} : vector<8x8xbf16>, vector<8x4xbf16>, vector<8x4xf32> -> vector<8x4xf32>
    %81 = vector.broadcast %78 : vector<8x1xf32> to vector<8x4xf32>
    %82 = arith.mulf %80, %81 : vector<8x4xf32>
    %83 = arith.truncf %82 : vector<8x4xf32> to vector<8x4xbf16>
    %c0_26 = arith.constant 0 : index
    %c12 = arith.constant 12 : index
    %84 = vector.load %arg7[%c0_26, %c12] : memref<8x32xbf16, #tpu.memory_space<vmem>>, vector<8x4xbf16>
    tpu.vector_store %arg7[%c0_26, %c12], %83 {strides = array<i32>} : memref<8x32xbf16, #tpu.memory_space<vmem>>, vector<8x4xbf16>,
    %85 = vector.extract_strided_slice %8 {offsets = [0, 16], sizes = [8, 4], strides = [1, 1]} : vector<8x32xbf16> to vector<8x4xbf16>
    %86 = vector.extract_strided_slice %10 {offsets = [0, 16], sizes = [8, 4], strides = [1, 1]} : vector<8x32xbf16> to vector<8x4xbf16>
    %87 = vector.extract_strided_slice %12 {offsets = [0, 16], sizes = [8, 4], strides = [1, 1]} : vector<8x32xbf16> to vector<8x4xbf16>
    %cst_27 = arith.constant dense<0.000000e+00> : vector<8x8xf32>
    %88 = tpu.matmul %85, %86, %cst_27 {dimension_numbers = #tpu.dot_dimension_numbers<[1], [1], [0], [0], [0, 0, 1, 0], [], []>} : vector<8x4xbf16>, vector<8x4xbf16>, vector<8x8xf32> -> vector<8x8xf32>
    %cst_28 = arith.constant dense<0xFF800000> : vector<8xf32>
    %89 = vector.multi_reduction <maximumf>, %88, %cst_28 [1] : vector<8x8xf32> to vector<8xf32>
    %90 = vector.shape_cast %89 : vector<8xf32> to vector<8x1xf32>
    %91 = vector.broadcast %90 : vector<8x1xf32> to vector<8x8xf32>
    %92 = arith.subf %88, %91 : vector<8x8xf32>
    %93 = math.exp %92 : vector<8x8xf32>
    %cst_29 = arith.constant dense<0.000000e+00> : vector<8xf32>
    %94 = vector.multi_reduction <add>, %93, %cst_29 [1] : vector<8x8xf32> to vector<8xf32>
    %95 = vector.shape_cast %94 : vector<8xf32> to vector<8x1xf32>
    %96 = tpu.reciprocal %95 {approx = true} : vector<8x1xf32> -> vector<8x1xf32>
    %97 = arith.truncf %93 : vector<8x8xf32> to vector<8x8xbf16>
    %cst_30 = arith.constant dense<0.000000e+00> : vector<8x4xf32>
    %98 = tpu.matmul %97, %87, %cst_30 {dimension_numbers = #tpu.dot_dimension_numbers<[1], [0], [0], [1], [0, 0, 1, 1], [], []>} : vector<8x8xbf16>, vector<8x4xbf16>, vector<8x4xf32> -> vector<8x4xf32>
    %99 = vector.broadcast %96 : vector<8x1xf32> to vector<8x4xf32>
    %100 = arith.mulf %98, %99 : vector<8x4xf32>
    %101 = arith.truncf %100 : vector<8x4xf32> to vector<8x4xbf16>
    %c0_31 = arith.constant 0 : index
    %c16 = arith.constant 16 : index
    %102 = vector.load %arg7[%c0_31, %c16] : memref<8x32xbf16, #tpu.memory_space<vmem>>, vector<8x4xbf16>
    tpu.vector_store %arg7[%c0_31, %c16], %101 {strides = array<i32>} : memref<8x32xbf16, #tpu.memory_space<vmem>>, vector<8x4xbf16>,
    %103 = vector.extract_strided_slice %8 {offsets = [0, 20], sizes = [8, 4], strides = [1, 1]} : vector<8x32xbf16> to vector<8x4xbf16>
    %104 = vector.extract_strided_slice %10 {offsets = [0, 20], sizes = [8, 4], strides = [1, 1]} : vector<8x32xbf16> to vector<8x4xbf16>
    %105 = vector.extract_strided_slice %12 {offsets = [0, 20], sizes = [8, 4], strides = [1, 1]} : vector<8x32xbf16> to vector<8x4xbf16>
    %cst_32 = arith.constant dense<0.000000e+00> : vector<8x8xf32>
    %106 = tpu.matmul %103, %104, %cst_32 {dimension_numbers = #tpu.dot_dimension_numbers<[1], [1], [0], [0], [0, 0, 1, 0], [], []>} : vector<8x4xbf16>, vector<8x4xbf16>, vector<8x8xf32> -> vector<8x8xf32>
    %cst_33 = arith.constant dense<0xFF800000> : vector<8xf32>
    %107 = vector.multi_reduction <maximumf>, %106, %cst_33 [1] : vector<8x8xf32> to vector<8xf32>
    %108 = vector.shape_cast %107 : vector<8xf32> to vector<8x1xf32>
    %109 = vector.broadcast %108 : vector<8x1xf32> to vector<8x8xf32>
    %110 = arith.subf %106, %109 : vector<8x8xf32>
    %111 = math.exp %110 : vector<8x8xf32>
    %cst_34 = arith.constant dense<0.000000e+00> : vector<8xf32>
    %112 = vector.multi_reduction <add>, %111, %cst_34 [1] : vector<8x8xf32> to vector<8xf32>
    %113 = vector.shape_cast %112 : vector<8xf32> to vector<8x1xf32>
    %114 = tpu.reciprocal %113 {approx = true} : vector<8x1xf32> -> vector<8x1xf32>
    %115 = arith.truncf %111 : vector<8x8xf32> to vector<8x8xbf16>
    %cst_35 = arith.constant dense<0.000000e+00> : vector<8x4xf32>
    %116 = tpu.matmul %115, %105, %cst_35 {dimension_numbers = #tpu.dot_dimension_numbers<[1], [0], [0], [1], [0, 0, 1, 1], [], []>} : vector<8x8xbf16>, vector<8x4xbf16>, vector<8x4xf32> -> vector<8x4xf32>
    %117 = vector.broadcast %114 : vector<8x1xf32> to vector<8x4xf32>
    %118 = arith.mulf %116, %117 : vector<8x4xf32>
    %119 = arith.truncf %118 : vector<8x4xf32> to vector<8x4xbf16>
    %c0_36 = arith.constant 0 : index
    %c20 = arith.constant 20 : index
    %120 = vector.load %arg7[%c0_36, %c20] : memref<8x32xbf16, #tpu.memory_space<vmem>>, vector<8x4xbf16>
    tpu.vector_store %arg7[%c0_36, %c20], %119 {strides = array<i32>} : memref<8x32xbf16, #tpu.memory_space<vmem>>, vector<8x4xbf16>,
    %121 = vector.extract_strided_slice %8 {offsets = [0, 24], sizes = [8, 4], strides = [1, 1]} : vector<8x32xbf16> to vector<8x4xbf16>
    %122 = vector.extract_strided_slice %10 {offsets = [0, 24], sizes = [8, 4], strides = [1, 1]} : vector<8x32xbf16> to vector<8x4xbf16>
    %123 = vector.extract_strided_slice %12 {offsets = [0, 24], sizes = [8, 4], strides = [1, 1]} : vector<8x32xbf16> to vector<8x4xbf16>
    %cst_37 = arith.constant dense<0.000000e+00> : vector<8x8xf32>
    %124 = tpu.matmul %121, %122, %cst_37 {dimension_numbers = #tpu.dot_dimension_numbers<[1], [1], [0], [0], [0, 0, 1, 0], [], []>} : vector<8x4xbf16>, vector<8x4xbf16>, vector<8x8xf32> -> vector<8x8xf32>
    %cst_38 = arith.constant dense<0xFF800000> : vector<8xf32>
    %125 = vector.multi_reduction <maximumf>, %124, %cst_38 [1] : vector<8x8xf32> to vector<8xf32>
    %126 = vector.shape_cast %125 : vector<8xf32> to vector<8x1xf32>
    %127 = vector.broadcast %126 : vector<8x1xf32> to vector<8x8xf32>
    %128 = arith.subf %124, %127 : vector<8x8xf32>
    %129 = math.exp %128 : vector<8x8xf32>
    %cst_39 = arith.constant dense<0.000000e+00> : vector<8xf32>
    %130 = vector.multi_reduction <add>, %129, %cst_39 [1] : vector<8x8xf32> to vector<8xf32>
    %131 = vector.shape_cast %130 : vector<8xf32> to vector<8x1xf32>
    %132 = tpu.reciprocal %131 {approx = true} : vector<8x1xf32> -> vector<8x1xf32>
    %133 = arith.truncf %129 : vector<8x8xf32> to vector<8x8xbf16>
    %cst_40 = arith.constant dense<0.000000e+00> : vector<8x4xf32>
    %134 = tpu.matmul %133, %123, %cst_40 {dimension_numbers = #tpu.dot_dimension_numbers<[1], [0], [0], [1], [0, 0, 1, 1], [], []>} : vector<8x8xbf16>, vector<8x4xbf16>, vector<8x4xf32> -> vector<8x4xf32>
    %135 = vector.broadcast %132 : vector<8x1xf32> to vector<8x4xf32>
    %136 = arith.mulf %134, %135 : vector<8x4xf32>
    %137 = arith.truncf %136 : vector<8x4xf32> to vector<8x4xbf16>
    %c0_41 = arith.constant 0 : index
    %c24 = arith.constant 24 : index
    %138 = vector.load %arg7[%c0_41, %c24] : memref<8x32xbf16, #tpu.memory_space<vmem>>, vector<8x4xbf16>
    tpu.vector_store %arg7[%c0_41, %c24], %137 {strides = array<i32>} : memref<8x32xbf16, #tpu.memory_space<vmem>>, vector<8x4xbf16>,
    %139 = vector.extract_strided_slice %8 {offsets = [0, 28], sizes = [8, 4], strides = [1, 1]} : vector<8x32xbf16> to vector<8x4xbf16>
    %140 = vector.extract_strided_slice %10 {offsets = [0, 28], sizes = [8, 4], strides = [1, 1]} : vector<8x32xbf16> to vector<8x4xbf16>
    %141 = vector.extract_strided_slice %12 {offsets = [0, 28], sizes = [8, 4], strides = [1, 1]} : vector<8x32xbf16> to vector<8x4xbf16>
    %cst_42 = arith.constant dense<0.000000e+00> : vector<8x8xf32>
    %142 = tpu.matmul %139, %140, %cst_42 {dimension_numbers = #tpu.dot_dimension_numbers<[1], [1], [0], [0], [0, 0, 1, 0], [], []>} : vector<8x4xbf16>, vector<8x4xbf16>, vector<8x8xf32> -> vector<8x8xf32>
    %cst_43 = arith.constant dense<0xFF800000> : vector<8xf32>
    %143 = vector.multi_reduction <maximumf>, %142, %cst_43 [1] : vector<8x8xf32> to vector<8xf32>
    %144 = vector.shape_cast %143 : vector<8xf32> to vector<8x1xf32>
    %145 = vector.broadcast %144 : vector<8x1xf32> to vector<8x8xf32>
    %146 = arith.subf %142, %145 : vector<8x8xf32>
    %147 = math.exp %146 : vector<8x8xf32>
    %cst_44 = arith.constant dense<0.000000e+00> : vector<8xf32>
    %148 = vector.multi_reduction <add>, %147, %cst_44 [1] : vector<8x8xf32> to vector<8xf32>
    %149 = vector.shape_cast %148 : vector<8xf32> to vector<8x1xf32>
    %150 = tpu.reciprocal %149 {approx = true} : vector<8x1xf32> -> vector<8x1xf32>
    %151 = arith.truncf %147 : vector<8x8xf32> to vector<8x8xbf16>
    %cst_45 = arith.constant dense<0.000000e+00> : vector<8x4xf32>
    %152 = tpu.matmul %151, %141, %cst_45 {dimension_numbers = #tpu.dot_dimension_numbers<[1], [0], [0], [1], [0, 0, 1, 1], [], []>} : vector<8x8xbf16>, vector<8x4xbf16>, vector<8x4xf32> -> vector<8x4xf32>
    %153 = vector.broadcast %150 : vector<8x1xf32> to vector<8x4xf32>
    %154 = arith.mulf %152, %153 : vector<8x4xf32>
    %155 = arith.truncf %154 : vector<8x4xf32> to vector<8x4xbf16>
    %c0_46 = arith.constant 0 : index
    %c28 = arith.constant 28 : index
    %156 = vector.load %arg7[%c0_46, %c28] : memref<8x32xbf16, #tpu.memory_space<vmem>>, vector<8x4xbf16>
    tpu.vector_store %arg7[%c0_46, %c28], %155 {strides = array<i32>} : memref<8x32xbf16, #tpu.memory_space<vmem>>, vector<8x4xbf16>,
    %c0_47 = arith.constant 0 : index
    %c0_48 = arith.constant 0 : index
    %157 = vector.load %arg7[%c0_47, %c0_48] : memref<8x32xbf16, #tpu.memory_space<vmem>>, vector<8x32xbf16>
    %c0_49 = arith.constant 0 : index
    %c0_50 = arith.constant 0 : index
    %158 = vector.load %arg4[%c0_49, %c0_50] : memref<32x32xbf16, #tpu.memory_space<vmem>>, vector<32x32xbf16>
    %cst_51 = arith.constant dense<0.000000e+00> : vector<8x32xf32>
    %159 = tpu.matmul %157, %158, %cst_51 {dimension_numbers = #tpu.dot_dimension_numbers<[1], [0], [0], [1], [0, 0, 1, 1], [], []>} : vector<8x32xbf16>, vector<32x32xbf16>, vector<8x32xf32> -> vector<8x32xf32>
    %c0_52 = arith.constant 0 : index
    %c0_53 = arith.constant 0 : index
    %160 = vector.load %arg5[%c0_52, %c0_53] : memref<1x32xf32, #tpu.memory_space<vmem>>, vector<1x32xf32>
    %161 = vector.broadcast %160 : vector<1x32xf32> to vector<8x32xf32>
    %162 = arith.addf %159, %161 : vector<8x32xf32>
    %c0_54 = arith.constant 0 : index
    %c0_55 = arith.constant 0 : index
    %c0_56 = arith.constant 0 : index
    %163 = vector.load %arg6[%c0_54, %c0_55, %c0_56] : memref<1x8x32xf32, #tpu.memory_space<vmem>>, vector<1x8x32xf32>
    %164 = vector.shape_cast %163 : vector<1x8x32xf32> to vector<8x32xf32>
    %165 = vector.shape_cast %162 : vector<8x32xf32> to vector<1x8x32xf32>
    tpu.vector_store %arg6[%c0_54, %c0_55, %c0_56], %165 {strides = array<i32>} : memref<1x8x32xf32, #tpu.memory_space<vmem>>, vector<1x8x32xf32>,
    return
  }
  func.func @transform_0(%arg0: i32) -> (i32, i32, i32) {
    %c0_i32 = arith.constant 0 : i32
    %c0_i32_0 = arith.constant 0 : i32
    %c0_i32_1 = arith.constant 0 : i32
    return %arg0, %c0_i32, %c0_i32_0 : i32, i32, i32
  }
  func.func @transform_1(%arg0: i32) -> (i32, i32) {
    %c0_i32 = arith.constant 0 : i32
    %c0_i32_0 = arith.constant 0 : i32
    %c0_i32_1 = arith.constant 0 : i32
    return %c0_i32, %c0_i32_0 : i32, i32
  }
  func.func @transform_2(%arg0: i32) -> (i32, i32) {
    %c0_i32 = arith.constant 0 : i32
    %c0_i32_0 = arith.constant 0 : i32
    %c0_i32_1 = arith.constant 0 : i32
    return %c0_i32, %c0_i32_0 : i32, i32
  }
  func.func @transform_3(%arg0: i32) -> (i32, i32) {
    %c0_i32 = arith.constant 0 : i32
    %c0_i32_0 = arith.constant 0 : i32
    %c0_i32_1 = arith.constant 0 : i32
    return %c0_i32, %c0_i32_0 : i32, i32
  }
  func.func @transform_4(%arg0: i32) -> (i32, i32) {
    %c0_i32 = arith.constant 0 : i32
    %c0_i32_0 = arith.constant 0 : i32
    %c0_i32_1 = arith.constant 0 : i32
    return %c0_i32, %c0_i32_0 : i32, i32
  }
  func.func @transform_5(%arg0: i32) -> (i32, i32, i32) {
    %c0_i32 = arith.constant 0 : i32
    %c0_i32_0 = arith.constant 0 : i32
    %c0_i32_1 = arith.constant 0 : i32
    return %arg0, %c0_i32, %c0_i32_0 : i32, i32, i32
  }
}

</mosaic_0001>

<llo_original>
// kernel: tpu_custom_call.1
$region0: #{tpu_custom_call.1}
  #allocation0 [shape = 'u32[]', space=smem, size = 0x4, offset = 0x4, fixed_abs, tag = 'smem constant byte address 0x4 - core index']
  #allocation1 [shape = 'u32[72,128]{1,0:T(1,128)}', space=vmem, size = 0x9000, scoped, tag = 'internal scratch']
  #allocation2 [shape = 'bf16[8,32]{1,0:T(8,128)(2,1)}', space=vmem, size = 0x800, scoped, tag = 'scratch operand']
  %s0 = inlined_call_operand.hbm [shape: bf16[2,8,32], index: 0, kind: input, shape index: {}]
  %s1 = inlined_call_operand.hbm [shape: bf16[32,96], index: 1, kind: input, shape index: {}]
  %s2 = inlined_call_operand.vmem [shape: f32[1,96], index: 2, kind: input, shape index: {}]
  %s3 = inlined_call_operand.hbm [shape: bf16[32,32], index: 3, kind: input, shape index: {}]
  %s4 = inlined_call_operand.vmem [shape: f32[1,32], index: 4, kind: input, shape index: {}]
  %s5 = inlined_call_operand.hbm [shape: f32[2,8,32], index: 5, kind: output, shape index: {}]
  %s6 = sld [smem:[#allocation0]]
  $region65: #{tpu_custom_call.1} parent=0
    _
  %s8 = ssub.s32 1, %s6
  %s9 = scalar_select 0, %s8, %s6
  $region1: #{tpu_custom_call.1} parent=0
    #allocation3 [shape = 'u8[4096]{0}', space=vmem, size = 0x1000, scoped, tag = 'input window, operand 0']
    #allocation4 [shape = 's32[2]{0}', space=sflag, size = 0x8, scoped, tag = 'scoped memory for tpu_custom_call.1']
    #allocation5 [shape = 's32[2]{0}', space=sflag, size = 0x8, scoped, tag = 'scoped memory for tpu_custom_call.1']
    #allocation6 [shape = 'u8[8192]{0}', space=vmem, size = 0x2000, scoped, tag = 'input window, operand 1, single buffered']
    #allocation7 [shape = 's32[1]{0}', space=sflag, size = 0x4, scoped, tag = 'scoped memory for tpu_custom_call.1']
    #allocation8 [shape = 'u8[8192]{0}', space=vmem, size = 0x2000, scoped, tag = 'input window, operand 3, single buffered']
    #allocation9 [shape = 'u8[8192]{0}', space=vmem, size = 0x2000, scoped, tag = 'output window, operand 0']
    %10 = vsyncpa [#allocation4], 0
    %s11 = scalar_lea.sflag [#allocation4], 1
    %12 = vsyncpa %s11, 0
    %13 = vsyncpa [#allocation7], 0
    %14 = vsyncpa [#allocation5], 0
    %s15 = scalar_lea.sflag [#allocation5], 1
    %16 = vsyncpa %s15, 0
    loop: start=0, step=1, limit=4
    $region2: #{tpu_custom_call.1} parent=1 // loop_pre_header
      _
    $region3: #{tpu_custom_call.1} parent=1 // loop_header
      %s18 = sphi 0, %s22
      %p19 = scmp.ge.s32.totalorder %s18, 4
      %s28 = sphi 0, %s30
      %s31 = sphi 0, %s28
      %s32 = sphi 0, %s31
      %s48 = sphi 0, %s32
      %s52 = sphi 0, %s52
      %s54 = sphi 0, %s52
      %s55 = sphi 0, %s54
      %s69 = sphi 0, %s55
      %s73 = sphi 0, %s73
      %s75 = sphi 0, %s73
      %s76 = sphi 0, %s75
      %s90 = sphi 0, %s76
      %s94 = sphi 0, %s94
      %s96 = sphi 0, %s94
      %s97 = sphi 0, %s96
      %s111 = sphi 0, %s97
      %s115 = sphi 0, %s115
      %s117 = sphi 0, %s115
      %s118 = sphi 0, %s117
      %s132 = sphi 0, %s118
      %s138 = sphi 0, %s140
      %s141 = sphi 0, %s138
      %s142 = sphi 0, %s141
      %s158 = sphi 0, %s142
    $region4: #{tpu_custom_call.1} parent=1 // loop_header_branch
      %21 = sbr.rel (%p19) target = $region8
    $region5: #{tpu_custom_call.1} parent=1 // loop_body
      %s23 = ssub.s32 %s18, 1
      %s24 = ssub.s32 %s18, 2
      %s25 = sadd.s32 %s18, 1
      %s26 = ssub.s32 %s18, %s25
      %p27 = scmp.eq.s32.totalorder %s26, 0
      %s29 = sadd.s32 %s28, 1
      %s30 = scalar_select %p27, %s28, %s29
      %p33 = pneg %p27
      %p34 = scmp.eq.s32.totalorder %s18, 1
      %p35 = por %p33, %p34
      %p36 = scmp.ne.s32.totalorder %s28, %s31
      %p37 = scmp.eq.s32.totalorder %s18, 0
      %p38 = por %p36, %p37
      %p39 = scmp.ne.s32.totalorder %s28, %s31
      %p40 = scmp.eq.s32.totalorder %s23, 1
      %p41 = por %p39, %p40
      %p42 = scmp.ne.s32.totalorder %s31, %s32
      %p43 = scmp.eq.s32.totalorder %s23, 0
      %p44 = por %p42, %p43
      %p45 = scmp.ne.s32.totalorder %s31, %s32
      %p46 = scmp.eq.s32.totalorder %s24, 1
      %p47 = por %p45, %p46
      %p49 = scmp.ne.s32.totalorder %s32, %s48
      %p50 = scmp.eq.s32.totalorder %s24, 0
      %p51 = por %p49, %p50
      %s53 = sadd.s32 %s52, 1
      %p56 = scmp.eq.s32.totalorder %s18, 1
      %p57 = scmp.ne.s32.totalorder %s52, %s54
      %p58 = scmp.eq.s32.totalorder %s18, 0
      %p59 = por %p57, %p58
      %p60 = scmp.ne.s32.totalorder %s52, %s54
      %p61 = scmp.eq.s32.totalorder %s23, 1
      %p62 = por %p60, %p61
      %p63 = scmp.ne.s32.totalorder %s54, %s55
      %p64 = scmp.eq.s32.totalorder %s23, 0
      %p65 = por %p63, %p64
      %p66 = scmp.ne.s32.totalorder %s54, %s55
      %p67 = scmp.eq.s32.totalorder %s24, 1
      %p68 = por %p66, %p67
      %p70 = scmp.ne.s32.totalorder %s55, %s69
      %p71 = scmp.eq.s32.totalorder %s24, 0
      %p72 = por %p70, %p71
      %s74 = sadd.s32 %s73, 1
      %p77 = scmp.eq.s32.totalorder %s18, 1
      %p78 = scmp.ne.s32.totalorder %s73, %s75
      %p79 = scmp.eq.s32.totalorder %s18, 0
      %p80 = por %p78, %p79
      %p81 = scmp.ne.s32.totalorder %s73, %s75
      %p82 = scmp.eq.s32.totalorder %s23, 1
      %p83 = por %p81, %p82
      %p84 = scmp.ne.s32.totalorder %s75, %s76
      %p85 = scmp.eq.s32.totalorder %s23, 0
      %p86 = por %p84, %p85
      %p87 = scmp.ne.s32.totalorder %s75, %s76
      %p88 = scmp.eq.s32.totalorder %s24, 1
      %p89 = por %p87, %p88
      %p91 = scmp.ne.s32.totalorder %s76, %s90
      %p92 = scmp.eq.s32.totalorder %s24, 0
      %p93 = por %p91, %p92
      %s95 = sadd.s32 %s94, 1
      %p98 = scmp.eq.s32.totalorder %s18, 1
      %p99 = scmp.ne.s32.totalorder %s94, %s96
      %p100 = scmp.eq.s32.totalorder %s18, 0
      %p101 = por %p99, %p100
      %p102 = scmp.ne.s32.totalorder %s94, %s96
      %p103 = scmp.eq.s32.totalorder %s23, 1
      %p104 = por %p102, %p103
      %p105 = scmp.ne.s32.totalorder %s96, %s97
      %p106 = scmp.eq.s32.totalorder %s23, 0
      %p107 = por %p105, %p106
      %p108 = scmp.ne.s32.totalorder %s96, %s97
      %p109 = scmp.eq.s32.totalorder %s24, 1
      %p110 = por %p108, %p109
      %p112 = scmp.ne.s32.totalorder %s97, %s111
      %p113 = scmp.eq.s32.totalorder %s24, 0
      %p114 = por %p112, %p113
      %s116 = sadd.s32 %s115, 1
      %p119 = scmp.eq.s32.totalorder %s18, 1
      %p120 = scmp.ne.s32.totalorder %s115, %s117
      %p121 = scmp.eq.s32.totalorder %s18, 0
      %p122 = por %p120, %p121
      %p123 = scmp.ne.s32.totalorder %s115, %s117
      %p124 = scmp.eq.s32.totalorder %s23, 1
      %p125 = por %p123, %p124
      %p126 = scmp.ne.s32.totalorder %s117, %s118
      %p127 = scmp.eq.s32.totalorder %s23, 0
      %p128 = por %p126, %p127
      %p129 = scmp.ne.s32.totalorder %s117, %s118
      %p130 = scmp.eq.s32.totalorder %s24, 1
      %p131 = por %p129, %p130
      %p133 = scmp.ne.s32.totalorder %s118, %s132
      %p134 = scmp.eq.s32.totalorder %s24, 0
      %p135 = por %p133, %p134
      %s136 = ssub.s32 %s18, %s25
      %p137 = scmp.eq.s32.totalorder %s136, 0
      %s139 = sadd.s32 %s138, 1
      %s140 = scalar_select %p137, %s138, %s139
      %p143 = pneg %p137
      %p144 = scmp.eq.s32.totalorder %s18, 1
      %p145 = por %p143, %p144
      %p146 = scmp.ne.s32.totalorder %s138, %s141
      %p147 = scmp.eq.s32.totalorder %s18, 0
      %p148 = por %p146, %p147
      %p149 = scmp.ne.s32.totalorder %s138, %s141
      %p150 = scmp.eq.s32.totalorder %s23, 1
      %p151 = por %p149, %p150
      %p152 = scmp.ne.s32.totalorder %s141, %s142
      %p153 = scmp.eq.s32.totalorder %s23, 0
      %p154 = por %p152, %p153
      %p155 = scmp.ne.s32.totalorder %s141, %s142
      %p156 = scmp.eq.s32.totalorder %s24, 1
      %p157 = por %p155, %p156
      %p159 = scmp.ne.s32.totalorder %s142, %s158
      %p160 = scmp.eq.s32.totalorder %s24, 0
      %p161 = por %p159, %p160
      %p162 = scmp.le.s32.totalorder 1, %s18
      %p163 = scmp.lt.s32.totalorder %s18, 3
      %p164 = pnand %p162, %p163
      %p165 = pneg %p164
      // Predicated region
      $region9: #{tpu_custom_call.1} parent=5 // pred_check
        _
      $region10: #{tpu_custom_call.1} parent=5 // pred_check_branch
        %167 = sbr.rel (%p164) target = $region12
      $region11: #{tpu_custom_call.1} parent=5 // pred_region
        %s168 = ssub.s32 %s18, 1
        // Predicated region
        $region13: #{tpu_custom_call.1} parent=11 // pred_check
          %p169 = pneg %p65
        $region14: #{tpu_custom_call.1} parent=11 // pred_check_branch
          %171 = sbr.rel (%p169) target = $region16
        $region15: #{tpu_custom_call.1} parent=11 // pred_region
          %173 = vsyncadd [#allocation7], 0
          %s174 = sshll.u32 %s1, 4
          %s175 = int_to_ptr.hbm [resolvable:$true] %s174
          %s176 = sshll.u32 [#allocation6], 4
          %s177 = int_to_ptr.vmem [resolvable:$true] %s176
          %182 = dma.hbm_to_vmem [thread:$0]  %s175, 256, %s177, [#allocation7], 64, 64, 4
        $region16: #{tpu_custom_call.1} parent=11 // pred_fallthru
          _
        // Predicated region
        $region17: #{tpu_custom_call.1} parent=11 // pred_check
          %p183 = pneg %p86
        $region18: #{tpu_custom_call.1} parent=11 // pred_check_branch
          %185 = sbr.rel (%p183) target = $region20
        $region19: #{tpu_custom_call.1} parent=11 // pred_region
          _
        $region20: #{tpu_custom_call.1} parent=11 // pred_fallthru
          _
        // Predicated region
        $region21: #{tpu_custom_call.1} parent=11 // pred_check
          %p186 = pneg %p107
        $region22: #{tpu_custom_call.1} parent=11 // pred_check_branch
          %188 = sbr.rel (%p186) target = $region24
        $region23: #{tpu_custom_call.1} parent=11 // pred_region
          %190 = vsyncadd [#allocation7], 0
          %s191 = sshll.u32 %s3, 4
          %s192 = int_to_ptr.hbm [resolvable:$true] %s191
          %s193 = sshll.u32 [#allocation8], 4
          %s194 = int_to_ptr.vmem [resolvable:$true] %s193
          %199 = dma.hbm_to_vmem [thread:$0]  %s192, 256, %s194, [#allocation7], 64, 64, 4
        $region24: #{tpu_custom_call.1} parent=11 // pred_fallthru
          _
        // Predicated region
        $region25: #{tpu_custom_call.1} parent=11 // pred_check
          %p200 = pneg %p128
        $region26: #{tpu_custom_call.1} parent=11 // pred_check_branch
          %202 = sbr.rel (%p200) target = $region28
        $region27: #{tpu_custom_call.1} parent=11 // pred_region
          _
        $region28: #{tpu_custom_call.1} parent=11 // pred_fallthru
          _
      $region12: #{tpu_custom_call.1} parent=5 // pred_fallthru
        _
      %p203 = scmp.lt.s32.totalorder %s18, 2
      // Predicated region
      $region29: #{tpu_custom_call.1} parent=5 // pred_check
        %p204 = pneg %p203
      $region30: #{tpu_custom_call.1} parent=5 // pred_check_branch
        %206 = sbr.rel (%p204) target = $region32
      $region31: #{tpu_custom_call.1} parent=5 // pred_region
        // Predicated region
        $region33: #{tpu_custom_call.1} parent=31 // pred_check
          %p207 = pneg %p38
        $region34: #{tpu_custom_call.1} parent=31 // pred_check_branch
          %209 = sbr.rel (%p207) target = $region36
        $region35: #{tpu_custom_call.1} parent=31 // pred_region
          %s210 = sand.u32 %s28, 1
          %s211 = scalar_lea.sflag [#allocation4], %s210
          %s212 = sand.u32 %s28, 1
          %s213 = smul.addr %s212, 4
          %s214 = scalar_lea.vmem [#allocation3], %s213
          %216 = vsyncadd %s211, 0
          %s217 = smul.addr %s18, 4
          %s218 = scalar_lea.hbm %s0, %s217
          %s220 = sshll.u32 %s218, 4
          %s221 = int_to_ptr.hbm [resolvable:$true] %s220
          %s222 = sshll.u32 %s214, 4
          %s223 = int_to_ptr.vmem [resolvable:$true] %s222
          %225 = dma.hbm_to_vmem [thread:$0]  %s221, 64, %s223, %s211
        $region36: #{tpu_custom_call.1} parent=31 // pred_fallthru
          _
      $region32: #{tpu_custom_call.1} parent=5 // pred_fallthru
        _
      %p226 = scmp.le.s32.totalorder 1, %s18
      %p227 = scmp.lt.s32.totalorder %s18, 3
      %p228 = pnand %p226, %p227
      %p229 = pneg %p228
      // Predicated region
      $region37: #{tpu_custom_call.1} parent=5 // pred_check
        _
      $region38: #{tpu_custom_call.1} parent=5 // pred_check_branch
        %231 = sbr.rel (%p228) target = $region40
      $region39: #{tpu_custom_call.1} parent=5 // pred_region
        %s232 = ssub.s32 %s18, 1
        %s233 = sand.u32 %s31, 1
        %s234 = scalar_lea.sflag [#allocation4], %s233
        %s235 = sand.u32 %s31, 1
        %s236 = smul.addr %s235, 4
        %s237 = scalar_lea.vmem [#allocation3], %s236
        // Predicated region
        $region41: #{tpu_custom_call.1} parent=39 // pred_check
          %p238 = pneg %p44
        $region42: #{tpu_custom_call.1} parent=39 // pred_check_branch
          %240 = sbr.rel (%p238) target = $region44
        $region43: #{tpu_custom_call.1} parent=39 // pred_region
          %242 = dma.done %s234, 64
        $region44: #{tpu_custom_call.1} parent=39 // pred_fallthru
          _
        // Predicated region
        $region45: #{tpu_custom_call.1} parent=39 // pred_check
          %p243 = pneg %p65
        $region46: #{tpu_custom_call.1} parent=39 // pred_check_branch
          %245 = sbr.rel (%p243) target = $region48
        $region47: #{tpu_custom_call.1} parent=39 // pred_region
          %247 = dma.done [#allocation7], 256
        $region48: #{tpu_custom_call.1} parent=39 // pred_fallthru
          _
        // Predicated region
        $region49: #{tpu_custom_call.1} parent=39 // pred_check
          %p248 = pneg %p107
        $region50: #{tpu_custom_call.1} parent=39 // pred_check_branch
          %250 = sbr.rel (%p248) target = $region52
        $region51: #{tpu_custom_call.1} parent=39 // pred_region
          %252 = dma.done [#allocation7], 256
        $region52: #{tpu_custom_call.1} parent=39 // pred_fallthru
          _
        %s253 = sand.u32 %s31, 1
        %s254 = scalar_lea.sflag [#allocation4], %s253
        %s255 = sand.u32 %s31, 1
        %s256 = smul.addr %s255, 4
        %s257 = scalar_lea.vmem [#allocation3], %s256
        %p258 = pneg %p44
        %p259 = pneg %p41
        %p260 = pneg %p65
        %p261 = pneg %p62
        %p262 = pneg %p86
        %p263 = pneg %p83
        %p264 = pneg %p107
        %p265 = pneg %p104
        %p266 = pneg %p128
        %p267 = pneg %p125
        %p268 = pneg %p154
        %p269 = pneg %p151
        %s270 = sand.u32 %s141, 1
        %s271 = scalar_lea.sflag [#allocation5], %s270
        %s272 = sand.u32 %s141, 1
        %s273 = smul.addr %s272, 8
        %s274 = scalar_lea.vmem [#allocation9], %s273
        %v276 = vld [vmem:[%s237] sm:$0xf]
        %v277 = vld [vmem:[#allocation6] sm:$0xf]
        %v278 = vld [vmem:[#allocation6 + $0x4] sm:$0xf]
        %v279 = vld [vmem:[#allocation6 + $0x8] sm:$0xf]
        %v280 = vld [vmem:[#allocation6 + $0xc] sm:$0xf]
        %v281 = vld [vmem:[%s2] sm:$0x1]
        %v283 = vperm.slane %v281, 0
        %v289 = vunpack.c.l.b16 %v277
        %v290 = vunpack.c.l.b16 %v278
        %v291 = vunpack.c.l.b16 %v279
        %v292 = vunpack.c.l.b16 %v280
        %v293 = vpack.c.b16 %v290, %v289
        %v294 = vpack.c.b16 %v292, %v291
        %vm297 = vcmask 261120
        %v299 = vsel %vm297, %v276, 0
        %301 = vmatpush.bf16.msra.mxu0 0
        %302 = vmatpush.bf16.msra.mxu0 0
        %303 = vmatpush.bf16.msra.mxu0 0
        %304 = vmatpush.bf16.msra.mxu0 0
        %305 = vmatpush.bf16.msra.mxu0 0
        %306 = vmatpush.bf16.msra.mxu0 0
        %307 = vmatpush.bf16.msra.mxu0 %v294
        %308 = vmatpush.bf16.msra.mxu0 %v293
        %309 = vmatmul.bf16.gmra.mxu0 %v299
        %v310 = vpop.f32.mrf.mxu0
        %v311 = vadd.f32 %v283, %v310
        %v312 = vpop.f32.mrf.mxu0
        %313 = vdwg.mxu0
        %v314 = vpack.c.bf16 %v311, %v311
        %v316 = vunpack.c.l.b16 %v314
        %v317 = vpack.c.b16 %v316, %v316
        %318 = vrot.lane.b32.xlu0 %v317, 96
        %v319 = vpop.permute.xlu0 %318
        %vm320 = vcmask 31744
        %v322 = vsel %vm320, %v314, 0
        %v325 = vsel %vm320, %v319, 0
        %327 = vmatpush.bf16.xpose.msra.mxu0 0
        %328 = vmatpush.bf16.xpose.msra.mxu0 0
        %329 = vmatpush.bf16.xpose.msra.mxu0 0
        %330 = vmatpush.bf16.xpose.msra.mxu0 0
        %331 = vmatpush.bf16.xpose.msra.mxu0 0
        %332 = vmatpush.bf16.xpose.msra.mxu0 0
        %333 = vmatpush.bf16.xpose.msra.mxu0 0
        %334 = vmatpush.bf16.xpose.msra.mxu0 %v325
        %335 = vmatmul.bf16.gmra.mxu0 %v322
        %v336 = vpop.f32.mrf.mxu0
        %v337 = vadd.f32 0.0, %v336
        %v338 = vpop.f32.mrf.mxu0
        %339 = vdwg.mxu0
        %vm340 = vcmask 64512
        %v341 = vsel %vm340, %v337, -inf
        %342 = vmax.xlane.f32.xlu0 %v341
        %v343 = vpop.xlane.xlu0 %342
        %v344 = vsub.f32 %v337, %v343
        %v345 = vmul.f32 %v344, 1.442695
        %v346 = vpow.pop %v345
        %v347 = vsel %vm340, %v346, 0.0
        %348 = vadd.xlane.f32.xlu0 %v347
        %v349 = vpop.xlane.xlu0 %348
        %v350 = vrcp.pop %v349
        %v351 = vpack.c.bf16 %v346, %v346
        %352 = vrot.lane.b32.xlu0 %v317, 64
        %v353 = vpop.permute.xlu0 %352
        %v355 = vsel %vm340, %v351, 0
        %vm357 = vcmask 1043456
        %v359 = vsel %vm357, %v353, 0
        %361 = vmatpush.bf16.msra.mxu0 0
        %362 = vmatpush.bf16.msra.mxu0 0
        %363 = vmatpush.bf16.msra.mxu0 0
        %364 = vmatpush.bf16.msra.mxu0 0
        %365 = vmatpush.bf16.msra.mxu0 0
        %366 = vmatpush.bf16.msra.mxu0 0
        %367 = vmatpush.bf16.msra.mxu0 0
        %368 = vmatpush.bf16.msra.mxu0 %v359
        %369 = vmatmul.bf16.gmra.mxu0 %v355
        %v370 = vpop.f32.mrf.mxu0
        %v371 = vadd.f32 0.0, %v370
        %v372 = vpop.f32.mrf.mxu0
        %373 = vdwg.mxu0
        %v374 = vmul.f32 %v371, %v350
        %v375 = vpack.c.bf16 %v374, %v374
        %vm376 = vcmask 27648
        %377 = vst.msk [vmem:[#allocation2] sm:$0xf] %vm376, %v375
        %378 = vrot.lane.b32.xlu0 %v317, 124
        %v379 = vpop.permute.xlu0 %378
        %380 = vrot.lane.b32.xlu0 %v317, 92
        %v381 = vpop.permute.xlu0 %380
        %v383 = vsel %vm320, %v379, 0
        %v386 = vsel %vm320, %v381, 0
        %388 = vmatpush.bf16.xpose.msra.mxu0 0
        %389 = vmatpush.bf16.xpose.msra.mxu0 0
        %390 = vmatpush.bf16.xpose.msra.mxu0 0
        %391 = vmatpush.bf16.xpose.msra.mxu0 0
        %392 = vmatpush.bf16.xpose.msra.mxu0 0
        %393 = vmatpush.bf16.xpose.msra.mxu0 0
        %394 = vmatpush.bf16.xpose.msra.mxu0 0
        %395 = vmatpush.bf16.xpose.msra.mxu0 %v386
        %396 = vmatmul.bf16.gmra.mxu0 %v383
        %v397 = vpop.f32.mrf.mxu0
        %v398 = vadd.f32 0.0, %v397
        %v399 = vpop.f32.mrf.mxu0
        %400 = vdwg.mxu0
        %v401 = vsel %vm340, %v398, -inf
        %402 = vmax.xlane.f32.xlu0 %v401
        %v403 = vpop.xlane.xlu0 %402
        %v404 = vsub.f32 %v398, %v403
        %v405 = vmul.f32 %v404, 1.442695
        %v406 = vpow.pop %v405
        %v407 = vsel %vm340, %v406, 0.0
        %408 = vadd.xlane.f32.xlu0 %v407
        %v409 = vpop.xlane.xlu0 %408
        %v410 = vrcp.pop %v409
        %v411 = vpack.c.bf16 %v406, %v406
        %412 = vrot.lane.b32.xlu0 %v317, 60
        %v413 = vpop.permute.xlu0 %412
        %v415 = vsel %vm340, %v411, 0
        %v418 = vsel %vm357, %v413, 0
        %420 = vmatpush.bf16.msra.mxu0 0
        %421 = vmatpush.bf16.msra.mxu0 0
        %422 = vmatpush.bf16.msra.mxu0 0
        %423 = vmatpush.bf16.msra.mxu0 0
        %424 = vmatpush.bf16.msra.mxu0 0
        %425 = vmatpush.bf16.msra.mxu0 0
        %426 = vmatpush.bf16.msra.mxu0 0
        %427 = vmatpush.bf16.msra.mxu0 %v418
        %428 = vmatmul.bf16.gmra.mxu0 %v415
        %v429 = vpop.f32.mrf.mxu0
        %v430 = vadd.f32 0.0, %v429
        %v431 = vpop.f32.mrf.mxu0
        %432 = vdwg.mxu0
        %v433 = vmul.f32 %v430, %v410
        %v434 = vpack.c.bf16 %v433, %v433
        %436 = vrot.lane.b32.xlu0 %v434, 4
        %v437 = vpop.permute.xlu0 %436
        %vm439 = vcmask 60448
        %440 = vst.msk [vmem:[#allocation2] sm:$0xf] %vm439, %v437
        %441 = vrot.lane.b32.xlu0 %v317, 120
        %v442 = vpop.permute.xlu0 %441
        %443 = vrot.lane.b32.xlu0 %v317, 88
        %v444 = vpop.permute.xlu0 %443
        %v446 = vsel %vm320, %v442, 0
        %v449 = vsel %vm320, %v444, 0
        %451 = vmatpush.bf16.xpose.msra.mxu0 0
        %452 = vmatpush.bf16.xpose.msra.mxu0 0
        %453 = vmatpush.bf16.xpose.msra.mxu0 0
        %454 = vmatpush.bf16.xpose.msra.mxu0 0
        %455 = vmatpush.bf16.xpose.msra.mxu0 0
        %456 = vmatpush.bf16.xpose.msra.mxu0 0
        %457 = vmatpush.bf16.xpose.msra.mxu0 0
        %458 = vmatpush.bf16.xpose.msra.mxu0 %v449
        %459 = vmatmul.bf16.gmra.mxu0 %v446
        %v460 = vpop.f32.mrf.mxu0
        %v461 = vadd.f32 0.0, %v460
        %v462 = vpop.f32.mrf.mxu0
        %463 = vdwg.mxu0
        %v464 = vsel %vm340, %v461, -inf
        %465 = vmax.xlane.f32.xlu0 %v464
        %v466 = vpop.xlane.xlu0 %465
        %v467 = vsub.f32 %v461, %v466
        %v468 = vmul.f32 %v467, 1.442695
        %v469 = vpow.pop %v468
        %v470 = vsel %vm340, %v469, 0.0
        %471 = vadd.xlane.f32.xlu0 %v470
        %v472 = vpop.xlane.xlu0 %471
        %v473 = vrcp.pop %v472
        %v474 = vpack.c.bf16 %v469, %v469
        %475 = vrot.lane.b32.xlu0 %v317, 56
        %v476 = vpop.permute.xlu0 %475
        %v478 = vsel %vm340, %v474, 0
        %v481 = vsel %vm357, %v476, 0
        %483 = vmatpush.bf16.msra.mxu0 0
        %484 = vmatpush.bf16.msra.mxu0 0
        %485 = vmatpush.bf16.msra.mxu0 0
        %486 = vmatpush.bf16.msra.mxu0 0
        %487 = vmatpush.bf16.msra.mxu0 0
        %488 = vmatpush.bf16.msra.mxu0 0
        %489 = vmatpush.bf16.msra.mxu0 0
        %490 = vmatpush.bf16.msra.mxu0 %v481
        %491 = vmatmul.bf16.gmra.mxu0 %v478
        %v492 = vpop.f32.mrf.mxu0
        %v493 = vadd.f32 0.0, %v492
        %v494 = vpop.f32.mrf.mxu0
        %495 = vdwg.mxu0
        %v496 = vmul.f32 %v493, %v473
        %v497 = vpack.c.bf16 %v496, %v496
        %499 = vrot.lane.b32.xlu0 %v497, 8
        %v500 = vpop.permute.xlu0 %499
        %vm502 = vcmask 93248
        %503 = vst.msk [vmem:[#allocation2] sm:$0xf] %vm502, %v500
        %504 = vrot.lane.b32.xlu0 %v317, 116
        %v505 = vpop.permute.xlu0 %504
        %506 = vrot.lane.b32.xlu0 %v317, 84
        %v507 = vpop.permute.xlu0 %506
        %v509 = vsel %vm320, %v505, 0
        %v512 = vsel %vm320, %v507, 0
        %514 = vmatpush.bf16.xpose.msra.mxu0 0
        %515 = vmatpush.bf16.xpose.msra.mxu0 0
        %516 = vmatpush.bf16.xpose.msra.mxu0 0
        %517 = vmatpush.bf16.xpose.msra.mxu0 0
        %518 = vmatpush.bf16.xpose.msra.mxu0 0
        %519 = vmatpush.bf16.xpose.msra.mxu0 0
        %520 = vmatpush.bf16.xpose.msra.mxu0 0
        %521 = vmatpush.bf16.xpose.msra.mxu0 %v512
        %522 = vmatmul.bf16.gmra.mxu0 %v509
        %v523 = vpop.f32.mrf.mxu0
        %v524 = vadd.f32 0.0, %v523
        %v525 = vpop.f32.mrf.mxu0
        %526 = vdwg.mxu0
        %v527 = vsel %vm340, %v524, -inf
        %528 = vmax.xlane.f32.xlu0 %v527
        %v529 = vpop.xlane.xlu0 %528
        %v530 = vsub.f32 %v524, %v529
        %v531 = vmul.f32 %v530, 1.442695
        %v532 = vpow.pop %v531
        %v533 = vsel %vm340, %v532, 0.0
        %534 = vadd.xlane.f32.xlu0 %v533
        %v535 = vpop.xlane.xlu0 %534
        %v536 = vrcp.pop %v535
        %v537 = vpack.c.bf16 %v532, %v532
        %538 = vrot.lane.b32.xlu0 %v317, 52
        %v539 = vpop.permute.xlu0 %538
        %v541 = vsel %vm340, %v537, 0
        %v544 = vsel %vm357, %v539, 0
        %546 = vmatpush.bf16.msra.mxu0 0
        %547 = vmatpush.bf16.msra.mxu0 0
        %548 = vmatpush.bf16.msra.mxu0 0
        %549 = vmatpush.bf16.msra.mxu0 0
        %550 = vmatpush.bf16.msra.mxu0 0
        %551 = vmatpush.bf16.msra.mxu0 0
        %552 = vmatpush.bf16.msra.mxu0 0
        %553 = vmatpush.bf16.msra.mxu0 %v544
        %554 = vmatmul.bf16.gmra.mxu0 %v541
        %v555 = vpop.f32.mrf.mxu0
        %v556 = vadd.f32 0.0, %v555
        %v557 = vpop.f32.mrf.mxu0
        %558 = vdwg.mxu0
        %v559 = vmul.f32 %v556, %v536
        %v560 = vpack.c.bf16 %v559, %v559
        %562 = vrot.lane.b32.xlu0 %v560, 12
        %v563 = vpop.permute.xlu0 %562
        %vm565 = vcmask 126048
        %566 = vst.msk [vmem:[#allocation2] sm:$0xf] %vm565, %v563
        %567 = vrot.lane.b32.xlu0 %v317, 112
        %v568 = vpop.permute.xlu0 %567
        %569 = vrot.lane.b32.xlu0 %v317, 80
        %v570 = vpop.permute.xlu0 %569
        %v572 = vsel %vm320, %v568, 0
        %v575 = vsel %vm320, %v570, 0
        %577 = vmatpush.bf16.xpose.msra.mxu0 0
        %578 = vmatpush.bf16.xpose.msra.mxu0 0
        %579 = vmatpush.bf16.xpose.msra.mxu0 0
        %580 = vmatpush.bf16.xpose.msra.mxu0 0
        %581 = vmatpush.bf16.xpose.msra.mxu0 0
        %582 = vmatpush.bf16.xpose.msra.mxu0 0
        %583 = vmatpush.bf16.xpose.msra.mxu0 0
        %584 = vmatpush.bf16.xpose.msra.mxu0 %v575
        %585 = vmatmul.bf16.gmra.mxu0 %v572
        %v586 = vpop.f32.mrf.mxu0
        %v587 = vadd.f32 0.0, %v586
        %v588 = vpop.f32.mrf.mxu0
        %589 = vdwg.mxu0
        %v590 = vsel %vm340, %v587, -inf
        %591 = vmax.xlane.f32.xlu0 %v590
        %v592 = vpop.xlane.xlu0 %591
        %v593 = vsub.f32 %v587, %v592
        %v594 = vmul.f32 %v593, 1.442695
        %v595 = vpow.pop %v594
        %v596 = vsel %vm340, %v595, 0.0
        %597 = vadd.xlane.f32.xlu0 %v596
        %v598 = vpop.xlane.xlu0 %597
        %v599 = vrcp.pop %v598
        %v600 = vpack.c.bf16 %v595, %v595
        %601 = vrot.lane.b32.xlu0 %v317, 48
        %v602 = vpop.permute.xlu0 %601
        %v604 = vsel %vm340, %v600, 0
        %v607 = vsel %vm357, %v602, 0
        %609 = vmatpush.bf16.msra.mxu0 0
        %610 = vmatpush.bf16.msra.mxu0 0
        %611 = vmatpush.bf16.msra.mxu0 0
        %612 = vmatpush.bf16.msra.mxu0 0
        %613 = vmatpush.bf16.msra.mxu0 0
        %614 = vmatpush.bf16.msra.mxu0 0
        %615 = vmatpush.bf16.msra.mxu0 0
        %616 = vmatpush.bf16.msra.mxu0 %v607
        %617 = vmatmul.bf16.gmra.mxu0 %v604
        %v618 = vpop.f32.mrf.mxu0
        %v619 = vadd.f32 0.0, %v618
        %v620 = vpop.f32.mrf.mxu0
        %621 = vdwg.mxu0
        %v622 = vmul.f32 %v619, %v599
        %v623 = vpack.c.bf16 %v622, %v622
        %625 = vrot.lane.b32.xlu0 %v623, 16
        %v626 = vpop.permute.xlu0 %625
        %vm628 = vcmask 158848
        %629 = vst.msk [vmem:[#allocation2] sm:$0xf] %vm628, %v626
        %630 = vrot.lane.b32.xlu0 %v317, 108
        %v631 = vpop.permute.xlu0 %630
        %632 = vrot.lane.b32.xlu0 %v317, 76
        %v633 = vpop.permute.xlu0 %632
        %v635 = vsel %vm320, %v631, 0
        %v638 = vsel %vm320, %v633, 0
        %640 = vmatpush.bf16.xpose.msra.mxu0 0
        %641 = vmatpush.bf16.xpose.msra.mxu0 0
        %642 = vmatpush.bf16.xpose.msra.mxu0 0
        %643 = vmatpush.bf16.xpose.msra.mxu0 0
        %644 = vmatpush.bf16.xpose.msra.mxu0 0
        %645 = vmatpush.bf16.xpose.msra.mxu0 0
        %646 = vmatpush.bf16.xpose.msra.mxu0 0
        %647 = vmatpush.bf16.xpose.msra.mxu0 %v638
        %648 = vmatmul.bf16.gmra.mxu0 %v635
        %v649 = vpop.f32.mrf.mxu0
        %v650 = vadd.f32 0.0, %v649
        %v651 = vpop.f32.mrf.mxu0
        %652 = vdwg.mxu0
        %v653 = vsel %vm340, %v650, -inf
        %654 = vmax.xlane.f32.xlu0 %v653
        %v655 = vpop.xlane.xlu0 %654
        %v656 = vsub.f32 %v650, %v655
        %v657 = vmul.f32 %v656, 1.442695
        %v658 = vpow.pop %v657
        %v659 = vsel %vm340, %v658, 0.0
        %660 = vadd.xlane.f32.xlu0 %v659
        %v661 = vpop.xlane.xlu0 %660
        %v662 = vrcp.pop %v661
        %v663 = vpack.c.bf16 %v658, %v658
        %664 = vrot.lane.b32.xlu0 %v317, 44
        %v665 = vpop.permute.xlu0 %664
        %v667 = vsel %vm340, %v663, 0
        %v670 = vsel %vm357, %v665, 0
        %672 = vmatpush.bf16.msra.mxu0 0
        %673 = vmatpush.bf16.msra.mxu0 0
        %674 = vmatpush.bf16.msra.mxu0 0
        %675 = vmatpush.bf16.msra.mxu0 0
        %676 = vmatpush.bf16.msra.mxu0 0
        %677 = vmatpush.bf16.msra.mxu0 0
        %678 = vmatpush.bf16.msra.mxu0 0
        %679 = vmatpush.bf16.msra.mxu0 %v670
        %680 = vmatmul.bf16.gmra.mxu0 %v667
        %v681 = vpop.f32.mrf.mxu0
        %v682 = vadd.f32 0.0, %v681
        %v683 = vpop.f32.mrf.mxu0
        %684 = vdwg.mxu0
        %v685 = vmul.f32 %v682, %v662
        %v686 = vpack.c.bf16 %v685, %v685
        %688 = vrot.lane.b32.xlu0 %v686, 20
        %v689 = vpop.permute.xlu0 %688
        %vm691 = vcmask 191648
        %692 = vst.msk [vmem:[#allocation2] sm:$0xf] %vm691, %v689
        %693 = vrot.lane.b32.xlu0 %v317, 104
        %v694 = vpop.permute.xlu0 %693
        %695 = vrot.lane.b32.xlu0 %v317, 72
        %v696 = vpop.permute.xlu0 %695
        %v698 = vsel %vm320, %v694, 0
        %v701 = vsel %vm320, %v696, 0
        %703 = vmatpush.bf16.xpose.msra.mxu0 0
        %704 = vmatpush.bf16.xpose.msra.mxu0 0
        %705 = vmatpush.bf16.xpose.msra.mxu0 0
        %706 = vmatpush.bf16.xpose.msra.mxu0 0
        %707 = vmatpush.bf16.xpose.msra.mxu0 0
        %708 = vmatpush.bf16.xpose.msra.mxu0 0
        %709 = vmatpush.bf16.xpose.msra.mxu0 0
        %710 = vmatpush.bf16.xpose.msra.mxu0 %v701
        %711 = vmatmul.bf16.gmra.mxu0 %v698
        %v712 = vpop.f32.mrf.mxu0
        %v713 = vadd.f32 0.0, %v712
        %v714 = vpop.f32.mrf.mxu0
        %715 = vdwg.mxu0
        %v716 = vsel %vm340, %v713, -inf
        %717 = vmax.xlane.f32.xlu0 %v716
        %v718 = vpop.xlane.xlu0 %717
        %v719 = vsub.f32 %v713, %v718
        %v720 = vmul.f32 %v719, 1.442695
        %v721 = vpow.pop %v720
        %v722 = vsel %vm340, %v721, 0.0
        %723 = vadd.xlane.f32.xlu0 %v722
        %v724 = vpop.xlane.xlu0 %723
        %v725 = vrcp.pop %v724
        %v726 = vpack.c.bf16 %v721, %v721
        %727 = vrot.lane.b32.xlu0 %v317, 40
        %v728 = vpop.permute.xlu0 %727
        %v730 = vsel %vm340, %v726, 0
        %v733 = vsel %vm357, %v728, 0
        %735 = vmatpush.bf16.msra.mxu0 0
        %736 = vmatpush.bf16.msra.mxu0 0
        %737 = vmatpush.bf16.msra.mxu0 0
        %738 = vmatpush.bf16.msra.mxu0 0
        %739 = vmatpush.bf16.msra.mxu0 0
        %740 = vmatpush.bf16.msra.mxu0 0
        %741 = vmatpush.bf16.msra.mxu0 0
        %742 = vmatpush.bf16.msra.mxu0 %v733
        %743 = vmatmul.bf16.gmra.mxu0 %v730
        %v744 = vpop.f32.mrf.mxu0
        %v745 = vadd.f32 0.0, %v744
        %v746 = vpop.f32.mrf.mxu0
        %747 = vdwg.mxu0
        %v748 = vmul.f32 %v745, %v725
        %v749 = vpack.c.bf16 %v748, %v748
        %751 = vrot.lane.b32.xlu0 %v749, 24
        %v752 = vpop.permute.xlu0 %751
        %vm754 = vcmask 224448
        %755 = vst.msk [vmem:[#allocation2] sm:$0xf] %vm754, %v752
        %756 = vrot.lane.b32.xlu0 %v317, 100
        %v757 = vpop.permute.xlu0 %756
        %758 = vrot.lane.b32.xlu0 %v317, 68
        %v759 = vpop.permute.xlu0 %758
        %v761 = vsel %vm320, %v757, 0
        %v764 = vsel %vm320, %v759, 0
        %766 = vmatpush.bf16.xpose.msra.mxu0 0
        %767 = vmatpush.bf16.xpose.msra.mxu0 0
        %768 = vmatpush.bf16.xpose.msra.mxu0 0
        %769 = vmatpush.bf16.xpose.msra.mxu0 0
        %770 = vmatpush.bf16.xpose.msra.mxu0 0
        %771 = vmatpush.bf16.xpose.msra.mxu0 0
        %772 = vmatpush.bf16.xpose.msra.mxu0 0
        %773 = vmatpush.bf16.xpose.msra.mxu0 %v764
        %774 = vmatmul.bf16.gmra.mxu0 %v761
        %v775 = vpop.f32.mrf.mxu0
        %v776 = vadd.f32 0.0, %v775
        %v777 = vpop.f32.mrf.mxu0
        %778 = vdwg.mxu0
        %v779 = vsel %vm340, %v776, -inf
        %780 = vmax.xlane.f32.xlu0 %v779
        %v781 = vpop.xlane.xlu0 %780
        %v782 = vsub.f32 %v776, %v781
        %v783 = vmul.f32 %v782, 1.442695
        %v784 = vpow.pop %v783
        %v785 = vsel %vm340, %v784, 0.0
        %786 = vadd.xlane.f32.xlu0 %v785
        %v787 = vpop.xlane.xlu0 %786
        %v788 = vrcp.pop %v787
        %v789 = vpack.c.bf16 %v784, %v784
        %790 = vrot.lane.b32.xlu0 %v317, 36
        %v791 = vpop.permute.xlu0 %790
        %v793 = vsel %vm340, %v789, 0
        %v796 = vsel %vm357, %v791, 0
        %798 = vmatpush.bf16.msra.mxu0 0
        %799 = vmatpush.bf16.msra.mxu0 0
        %800 = vmatpush.bf16.msra.mxu0 0
        %801 = vmatpush.bf16.msra.mxu0 0
        %802 = vmatpush.bf16.msra.mxu0 0
        %803 = vmatpush.bf16.msra.mxu0 0
        %804 = vmatpush.bf16.msra.mxu0 0
        %805 = vmatpush.bf16.msra.mxu0 %v796
        %806 = vmatmul.bf16.gmra.mxu0 %v793
        %v807 = vpop.f32.mrf.mxu0
        %v808 = vadd.f32 0.0, %v807
        %v809 = vpop.f32.mrf.mxu0
        %810 = vdwg.mxu0
        %v811 = vmul.f32 %v808, %v788
        %v812 = vpack.c.bf16 %v811, %v811
        %814 = vrot.lane.b32.xlu0 %v812, 28
        %v815 = vpop.permute.xlu0 %814
        %vm817 = vcmask 257248
        %818 = vst.msk [vmem:[#allocation2] sm:$0xf] %vm817, %v815
        %v819 = vld [vmem:[#allocation2] sm:$0xf]
        %v820 = vld [vmem:[#allocation8] sm:$0xf]
        %v821 = vld [vmem:[#allocation8 + $0x4] sm:$0xf]
        %v822 = vld [vmem:[#allocation8 + $0x8] sm:$0xf]
        %v823 = vld [vmem:[#allocation8 + $0xc] sm:$0xf]
        %v824 = vld [vmem:[%s4] sm:$0x1]
        %v826 = vperm.slane %v824, 0
        %v832 = vunpack.c.l.b16 %v820
        %v833 = vunpack.c.l.b16 %v821
        %v834 = vunpack.c.l.b16 %v822
        %v835 = vunpack.c.l.b16 %v823
        %v836 = vpack.c.b16 %v833, %v832
        %v837 = vpack.c.b16 %v835, %v834
        %v841 = vsel %vm297, %v819, 0
        %843 = vmatpush.bf16.msra.mxu0 0
        %844 = vmatpush.bf16.msra.mxu0 0
        %845 = vmatpush.bf16.msra.mxu0 0
        %846 = vmatpush.bf16.msra.mxu0 0
        %847 = vmatpush.bf16.msra.mxu0 0
        %848 = vmatpush.bf16.msra.mxu0 0
        %849 = vmatpush.bf16.msra.mxu0 %v837
        %850 = vmatpush.bf16.msra.mxu0 %v836
        %851 = vmatmul.bf16.gmra.mxu0 %v841
        %v852 = vpop.f32.mrf.mxu0
        %v853 = vadd.f32 %v826, %v852
        %v854 = vpop.f32.mrf.mxu0
        %855 = vdwg.mxu0
        %856 = vst.msk [vmem:[%s274] sm:$0xff] %vm297, %v853
        %s857 = sand.u32 %s141, 1
        %s858 = scalar_lea.sflag [#allocation5], %s857
        %s859 = sand.u32 %s141, 1
        %s860 = smul.addr %s859, 8
        %s861 = scalar_lea.vmem [#allocation9], %s860
        // Predicated region
        $region53: #{tpu_custom_call.1} parent=39 // pred_check
          %p862 = pneg %p151
        $region54: #{tpu_custom_call.1} parent=39 // pred_check_branch
          %864 = sbr.rel (%p862) target = $region56
        $region55: #{tpu_custom_call.1} parent=39 // pred_region
          %866 = vsyncadd %s858, 0
          %s867 = smul.addr %s23, 8
          %s868 = scalar_lea.hbm %s5, %s867
          %s870 = sshll.u32 %s861, 4
          %s871 = int_to_ptr.vmem [resolvable:$true] %s870
          %s872 = sshll.u32 %s868, 4
          %s873 = int_to_ptr.hbm [resolvable:$true] %s872
          %875 = dma.vmem_to_hbm [thread:$0]  %s871, 128, %s873, %s858
        $region56: #{tpu_custom_call.1} parent=39 // pred_fallthru
          _
      $region40: #{tpu_custom_call.1} parent=5 // pred_fallthru
        _
      %p876 = scmp.le.s32.totalorder 2, %s18
      // Predicated region
      $region57: #{tpu_custom_call.1} parent=5 // pred_check
        %p877 = pneg %p876
      $region58: #{tpu_custom_call.1} parent=5 // pred_check_branch
        %879 = sbr.rel (%p877) target = $region60
      $region59: #{tpu_custom_call.1} parent=5 // pred_region
        %s880 = ssub.s32 %s18, 2
        // Predicated region
        $region61: #{tpu_custom_call.1} parent=59 // pred_check
          %p881 = pneg %p157
        $region62: #{tpu_custom_call.1} parent=59 // pred_check_branch
          %883 = sbr.rel (%p881) target = $region64
        $region63: #{tpu_custom_call.1} parent=59 // pred_region
          %s884 = sand.u32 %s142, 1
          %s885 = scalar_lea.sflag [#allocation5], %s884
          %s886 = sand.u32 %s142, 1
          %s887 = smul.addr %s886, 8
          %s888 = scalar_lea.vmem [#allocation9], %s887
          %890 = dma.done %s885, 128
        $region64: #{tpu_custom_call.1} parent=59 // pred_fallthru
          _
      $region60: #{tpu_custom_call.1} parent=5 // pred_fallthru
        _
    $region6: #{tpu_custom_call.1} parent=1 // loop_footer
      %s22 = sadd.s32 1, %s18
    $region7: #{tpu_custom_call.1} parent=1 // loop_footer_branch
      %17 = sbr.rel target = $region3
    $region8: #{tpu_custom_call.1} parent=1 // loop_exit
      _
    %891 = vsyncpa [#allocation4], 1
    %s892 = scalar_lea.sflag [#allocation4], 1
    %893 = vsyncpa %s892, 1
    %894 = vsyncpa [#allocation7], 1
    %895 = vsyncpa [#allocation5], 1
    %s896 = scalar_lea.sflag [#allocation5], 1
    %897 = vsyncpa %s896, 1

</llo_original>
